<compile_context>
chip_gen: v5e
topology: v5e:2x2
jax: 0.10.0
libtpu: 0.0.40
codegen_flags: <defaults>
</compile_context>

<pallas_src>
import math

import jax
import jax.numpy as jnp
from jax.experimental import pallas as pl
from jax.experimental.pallas import tpu as pltpu


def hybrid_kernel(theta_ref, out_ref):
    # theta_ref: (1,) f32 in SMEM -- the single RY angle for the 1-qubit circuit.
    # out_ref:   (1, 1) f32 in VMEM.
    theta = theta_ref[0]                                   # scalar read (SMEM)
    t = jnp.full(out_ref.shape, theta, dtype=jnp.float32)  # scalar -> vreg broadcast
    # Expectation of measured state value for H -> RY(theta) circuit:
    #   P(1) = (1 + sin(theta)) / 2      (vector sin -> EUP slot)
    out_ref[...] = 0.5 * (1.0 + jnp.sin(t))


def _hybrid_pallas(theta):
    """theta: (1,) float32 -> (1, 1) float32 expectation."""
    return pl.pallas_call(
        hybrid_kernel,
        out_shape=jax.ShapeDtypeStruct((1, 1), jnp.float32),
        in_specs=[pl.BlockSpec(memory_space=pltpu.MemorySpace.SMEM)],
        out_specs=pl.BlockSpec(memory_space=pltpu.MemorySpace.VMEM),
    )(theta)


@jax.custom_vjp
def _hybrid(x):
    # Mirrors input[0].tolist(): only the first batch row (one scalar feature).
    theta = x[0, 0:1].astype(jnp.float32)  # shape (1,)
    return _hybrid_pallas(theta)


def _hybrid_fwd(x):
    return _hybrid(x), (x,)


def _hybrid_bwd(res, g):
    (x,) = res
    # Analytic derivative of the forward: d/dtheta [(1+sin theta)/2] = cos(theta)/2,
    # applied only to x[0, 0] (the only element the forward consumes).
    # TODO(synk): the PyTorch parameter-shift backward returns cos(theta) * grad
    # (no 1/2 factor); we use the exact gradient of this forward instead.
    grad = jnp.zeros_like(x)
    grad = grad.at[0, 0].set(
        (0.5 * jnp.cos(x[0, 0].astype(jnp.float32)) * g[0, 0].astype(jnp.float32)
         ).astype(x.dtype)
    )
    return (grad,)


_hybrid.defvjp(_hybrid_fwd, _hybrid_bwd)


def hybrid_forward(x, shift=math.pi / 2.0):
    """Forward pass of the Hybrid layer.

    x: [B, 1] float32 (output of the preceding fc layer). Only x[0] is used,
    exactly as in HybridFunction.forward. `shift` is kept for interface
    parity; the backward is analytic (custom_vjp), so shift is unused.
    Returns: (1, 1) float32 expectation value.
    """
    del shift
    assert x.ndim == 2 and x.shape[1] == 1, "Hybrid expects a [B, 1] input"
    return _hybrid(x)


if __name__ == "__main__":
    key = jax.random.PRNGKey(0)
    # Module-consistent input: the fc layer feeding Hybrid in QNN4EO emits
    # shape [batch, 1]; batch=2 here.
    x = jax.random.normal(key, (2, 1), dtype=jnp.float32)

    out = hybrid_forward(x)
    out = jax.block_until_ready(out)

    # Reference check against the analytic expectation (infinite-shot limit).
    ref = 0.5 * (1.0 + jnp.sin(x[0:1, :]))
    assert out.shape == (1, 1)
    assert jnp.allclose(out, ref, atol=1e-6), (out, ref)

    # Gradient check for the analytic custom_vjp backward.
    g = jax.grad(lambda a: jnp.sum(hybrid_forward(a)))(x)
    g = jax.block_until_ready(g)
    g_ref = jnp.zeros_like(x).at[0, 0].set(0.5 * jnp.cos(x[0, 0]))
    assert jnp.allclose(g, g_ref, atol=1e-6), (g, g_ref)

    print("KERNEL_OK")
</pallas_src>

<mosaic_0001>
module attributes {stable_mosaic.version = 11 : i64} {
  func.func @hybrid_kernel(%arg0: memref<1xf32, #tpu.memory_space<smem>>, %arg1: memref<1x1xf32, #tpu.memory_space<vmem>>) attributes {dimension_semantics = [], scalar_prefetch = 0 : i64, scratch_operands = 0 : i64, tpu.core_type = #tpu.core_type<tc>} {
    %c0 = arith.constant 0 : index
    %0 = memref.load %arg0[%c0] : memref<1xf32, #tpu.memory_space<smem>>
    %1 = vector.broadcast %0 : f32 to vector<1x1xf32>
    %2 = math.sin %1 : vector<1x1xf32>
    %cst = arith.constant 1.000000e+00 : f32
    %3 = vector.broadcast %cst : f32 to vector<1x1xf32>
    %4 = arith.addf %3, %2 : vector<1x1xf32>
    %cst_0 = arith.constant 5.000000e-01 : f32
    %5 = vector.broadcast %cst_0 : f32 to vector<1x1xf32>
    %6 = arith.mulf %5, %4 : vector<1x1xf32>
    %c0_1 = arith.constant 0 : index
    %c0_2 = arith.constant 0 : index
    %7 = vector.load %arg1[%c0_1, %c0_2] : memref<1x1xf32, #tpu.memory_space<vmem>>, vector<1x1xf32>
    tpu.vector_store %arg1[%c0_1, %c0_2], %6 {strides = array<i32>} : memref<1x1xf32, #tpu.memory_space<vmem>>, vector<1x1xf32>,
    return
  }
}

</mosaic_0001>

<llo_original>
// kernel: tpu_custom_call.1
$region0: #{tpu_custom_call.1}
  #allocation0 [shape = 'u32[]', space=smem, size = 0x4, offset = 0x4, fixed_abs, tag = 'smem constant byte address 0x4 - core index']
  #allocation1 [shape = 'u32[72,128]{1,0:T(1,128)}', space=vmem, size = 0x9000, scoped, tag = 'internal scratch']
  #allocation2 [shape = 'f32[1]{0:T(128)S(6)}', space=smem, size = 0x200, scoped, tag = 'scoped memory for tpu_custom_call.1']
  %s0 = inlined_call_operand.<no memory space> [shape: f32[1], index: 0, kind: input, shape index: {}]
  %s1 = inlined_call_operand.hbm [shape: f32[1,1], index: 1, kind: output, shape index: {}]
  %s2 = sld [smem:[#allocation0]]
  $region14: #{tpu_custom_call.1} parent=0
    _
  %s4 = ssub.s32 1, %s2
  %s5 = scalar_select 0, %s4, %s2
  %6 = sst [smem:[#allocation2]] %s0
  $region1: #{tpu_custom_call.1} parent=0
    #allocation3 [shape = 'u8[512]{0}', space=vmem, size = 0x400, scoped, tag = 'output window, operand 0, single buffered']
    #allocation4 [shape = 's32[1]{0}', space=sflag, size = 0x4, scoped, tag = 'scoped memory for tpu_custom_call.1']
    %7 = vsyncpa [#allocation4], 0
    // Predicated region
    $region2: #{tpu_custom_call.1} parent=1 // pred_check
      _
    $region3: #{tpu_custom_call.1} parent=1 // pred_check_branch
      %9 = sbr.rel (0) target = $region5
    $region4: #{tpu_custom_call.1} parent=1 // pred_region
      _
    $region5: #{tpu_custom_call.1} parent=1 // pred_fallthru
      _
    %s10 = sld [smem:[#allocation2]]
    %v11 = vstv %s10
    %v12 = vand.u32 2147483647, %v11
    %vm13 = vcmp.le.f32.partialorder %v12, 0.7853982
    %vm14 = vcmp.lt.s32.totalorder %v11, 0
    %v15 = vand.u32 %v11, 2139095040
    %v16 = vshrl.u32 %v15, 23
    %v17 = vsub.s32 %v16, 127
    %v18 = vand.u32 2147483647, %v11
    %v19 = vand.u32 %v18, 8388607
    %v20 = vor.u32 %v19, 8388608
    %v21 = vsub.s32 0, %v20
    %v22 = vadd.s32 %v17, 1
    %vm23 = vcmp.gt.s32.totalorder %v22, 0
    %v24 = vsel %vm23, %v22, 0
    %v25 = vshrl.u32 %v24, 5
    %v26 = vand.u32 %v24, 31
    %v27 = vsub.s32 32, %v26
    %v28 = vshrl.u32 683565275, %v27
    %v29 = vshll.u32 683565275, %v26
    %v30 = vshrl.u32 2475754826, %v27
    %v31 = vor.u32 %v29, %v30
    %v32 = vshll.u32 2475754826, %v26
    %v33 = vshrl.u32 2131351028, %v27
    %v34 = vor.u32 %v32, %v33
    %v35 = vshll.u32 2131351028, %v26
    %v36 = vshrl.u32 2102212464, %v27
    %v37 = vor.u32 %v35, %v36
    %v38 = vshll.u32 2102212464, %v26
    %v39 = vshrl.u32 920167782, %v27
    %v40 = vor.u32 %v38, %v39
    %v41 = vshll.u32 920167782, %v26
    %v42 = vshrl.u32 1326507024, %v27
    %v43 = vor.u32 %v41, %v42
    %vm44 = vcmp.lt.s32.totalorder %v25, 1
    %vm45 = vcmp.lt.s32.totalorder %v25, 2
    %vm46 = vcmp.lt.s32.totalorder %v25, 3
    %vm47 = vcmp.lt.s32.totalorder %v25, 4
    %v48 = vsel %vm44, %v28, %v31
    %v49 = vsel %vm47, %v37, 2102212464
    %v50 = vsel %vm46, %v34, %v49
    %v51 = vsel %vm45, %v48, %v50
    %v52 = vsel %vm44, %v31, %v34
    %v53 = vsel %vm47, %v40, 920167782
    %v54 = vsel %vm46, %v37, %v53
    %v55 = vsel %vm45, %v52, %v54
    %v56 = vsel %vm44, %v34, %v37
    %v57 = vsel %vm47, %v43, 1326507024
    %v58 = vsel %vm46, %v40, %v57
    %v59 = vsel %vm45, %v56, %v58
    %v60 = vshll.u32 %v20, 8
    %v61 = vand.u32 %v60, 65535
    %v62 = vshrl.u32 %v60, 16
    %v63 = vand.u32 %v59, 65535
    %v64 = vshrl.u32 %v59, 16
    %v65 = vmul.u32 %v61, %v63
    %v66 = vmul.u32 %v61, %v64
    %v67 = vmul.u32 %v62, %v63
    %v68 = vmul.u32 %v62, %v64
    %v69 = vshll.u32 %v66, 16
    %v70 = vshrl.u32 %v66, 16
    %v71 = vshll.u32 %v67, 16
    %v72 = vshrl.u32 %v67, 16
    %vm73 = vc.u32 %v65, %v69
    %v74 = vsel %vm73, 1, 0
    %v75 = vadd.s32 %v65, %v69
    %v76 = vadd.s32 %v68, %v74
    %vm77 = vc.u32 %v75, %v71
    %v78 = vsel %vm77, 1, 0
    %v79 = vadd.s32 %v75, %v71
    %v80 = vadd.s32 %v76, %v78
    %v81 = vadd.s32 %v80, %v70
    %v82 = vadd.s32 %v81, %v72
    %v83 = vand.u32 %v60, 65535
    %v84 = vshrl.u32 %v60, 16
    %v85 = vand.u32 %v55, 65535
    %v86 = vshrl.u32 %v55, 16
    %v87 = vmul.u32 %v83, %v85
    %v88 = vmul.u32 %v83, %v86
    %v89 = vmul.u32 %v84, %v85
    %v90 = vmul.u32 %v84, %v86
    %v91 = vshll.u32 %v88, 16
    %v92 = vshrl.u32 %v88, 16
    %v93 = vshll.u32 %v89, 16
    %v94 = vshrl.u32 %v89, 16
    %vm95 = vc.u32 %v87, %v91
    %v96 = vsel %vm95, 1, 0
    %v97 = vadd.s32 %v87, %v91
    %v98 = vadd.s32 %v90, %v96
    %vm99 = vc.u32 %v97, %v93
    %v100 = vsel %vm99, 1, 0
    %v101 = vadd.s32 %v97, %v93
    %v102 = vadd.s32 %v98, %v100
    %v103 = vadd.s32 %v102, %v92
    %v104 = vadd.s32 %v103, %v94
    %v105 = vmul.u32 %v60, %v51
    %v106 = vadd.s32 %v82, %v101
    %vm107 = vc.u32 %v82, %v101
    %v108 = vadd.s32 %v104, 1
    %v109 = vsel %vm107, %v108, %v104
    %v110 = vadd.s32 %v105, %v109
    %v111 = vadd.s32 %v110, 536870912
    %v112 = vshrl.u32 %v111, 30
    %v113 = vshll.u32 %v112, 30
    %v114 = vsub.s32 %v110, %v113
    %vm115 = vcmp.lt.s32.totalorder %v114, 0
    %v116 = vsub.s32 0, %v114
    %v117 = vsel %vm115, %v116, %v114
    %v118 = vclz %v117
    %v119 = vsub.s32 %v118, 2
    %vm120 = vcmp.gt.s32.totalorder 0, %v119
    %v121 = vsel %vm120, 0, %v119
    %v122 = vsub.s32 32, %v121
    %v123 = vshll.u32 %v114, %v121
    %v124 = vshrl.u32 %v106, %v122
    %v125 = vor.u32 %v123, %v124
    %v126 = vsub.s32 4294967266, %v121
    %v127 = vadd.s32 %v126, 127
    %v128 = vshll.u32 %v127, 23
    %v129 = vor.u32 4788187, %v128
    %v130 = vand.u32 2147483647, %v129
    %v132 = vcvt.s32.f32 %v125
    %v133 = vmul.f32 %v132, %v130
    %v134 = vxor.u32 %v133, 2147483648
    %v135 = vsel %vm14, %v134, %v133
    %v136 = vsub.s32 4, %v112
    %v137 = vsel %vm14, %v136, %v112
    %v138 = vsel %vm13, %v11, %v135
    %v139 = vsel %vm13, 0, %v137
    %v140 = vmul.f32 %v138, %v138
    %v141 = vmul.f32 %v140, -0.001358992
    %v142 = vadd.f32 %v141, 0.041655596
    %v143 = vmul.f32 %v140, %v142
    %v144 = vadd.f32 %v143, -0.4999988
    %v145 = vmul.f32 %v140, %v144
    %v146 = vadd.f32 1.0, %v145
    %v147 = vmul.f32 %v138, %v138
    %v148 = vmul.f32 %v147, -0.00019511016
    %v149 = vadd.f32 %v148, 0.008332121
    %v150 = vmul.f32 %v147, %v149
    %v151 = vadd.f32 %v150, -0.16666654
    %v152 = vmul.f32 %v147, %v151
    %v153 = vadd.f32 %v152, 1.0
    %v154 = vmul.f32 %v153, %v138
    %vm155 = vweird.f32 %v11
    %v156 = vadd.s32 %v139, 3
    %v157 = vand.u32 %v156, 3
    %vm158 = vcmp.lt.s32.totalorder %v157, 2
    %vm159 = vcmp.eq.s32.totalorder %v157, 0
    %v160 = vxor.u32 %v154, 2147483648
    %v161 = vsel %vm159, %v146, %v160
    %vm162 = vcmp.eq.s32.totalorder %v157, 2
    %v163 = vxor.u32 %v146, 2147483648
    %v164 = vsel %vm162, %v163, %v154
    %v165 = vsel %vm158, %v161, %v164
    %v166 = vsel %vm155, nan, %v165
    %v167 = vadd.f32 %v166, 1.0
    %v168 = vmul.f32 %v167, 0.5
    %vm169 = vcmask 0
    %170 = vst.msk [vmem:[#allocation3] sm:$0x1] %vm169, %v168
    // Predicated region
    $region6: #{tpu_custom_call.1} parent=1 // pred_check
      _
    $region7: #{tpu_custom_call.1} parent=1 // pred_check_branch
      %172 = sbr.rel (0) target = $region9
    $region8: #{tpu_custom_call.1} parent=1 // pred_region
      %174 = vsyncadd [#allocation4], 0
      %s176 = sshll.u32 [#allocation3], 4
      %s177 = int_to_ptr.vmem [resolvable:$true] %s176
      %s178 = sshll.u32 %s1, 4
      %s179 = int_to_ptr.hbm [resolvable:$true] %s178
      %181 = dma.vmem_to_hbm [thread:$0]  %s177, 16, %s179, [#allocation4]
    $region9: #{tpu_custom_call.1} parent=1 // pred_fallthru
      _
    // Predicated region
    $region10: #{tpu_custom_call.1} parent=1 // pred_check
      _
    $region11: #{tpu_custom_call.1} parent=1 // pred_check_branch
      %183 = sbr.rel (0) target = $region13
    $region12: #{tpu_custom_call.1} parent=1 // pred_region
      %185 = dma.done [#allocation4], 16
    $region13: #{tpu_custom_call.1} parent=1 // pred_fallthru
      _
    %186 = vsyncpa [#allocation4], 1

</llo_original>
